<compile_context>
chip_gen: v7x
topology: tpu7x:2x2x1
jax: 0.10.0
libtpu: 0.0.40
codegen_flags: <defaults>
</compile_context>

<pallas_src>
import jax
import jax.numpy as jnp
from jax.experimental import pallas as pl
from jax.experimental.pallas import tpu as pltpu


def _round_up(n, m):
    return ((n + m - 1) // m) * m


def _mlp_kernel(w1_ref, b1_ref, w2_ref, b2_ref, x_ref, o_ref):
    """One batch tile.

    w1_ref: (10, 3) SMEM   fc1.weight (PyTorch (out, in) layout)
    b1_ref: (10,)   SMEM   fc1.bias
    w2_ref: (10,)   SMEM   fc2.weight flattened
    b2_ref: (1,)    SMEM   fc2.bias
    x_ref : (3, TB) VMEM   input, features on sublanes, batch on lanes
    o_ref : (1, TB) VMEM   output, batch on lanes
    """
    x0 = x_ref[0:1, :]                       # (1, TB)
    x1 = x_ref[1:2, :]
    x2 = x_ref[2:3, :]

    y = jnp.zeros_like(x0)
    # Fully unrolled over the 10 hidden units: 3 broadcast FMAs + bias + ReLU
    # + 1 FMA into the output accumulator per unit. Pure VPU, no MXU latency.
    for o in range(10):
        h = (w1_ref[o, 0] * x0
             + w1_ref[o, 1] * x1
             + w1_ref[o, 2] * x2
             + b1_ref[o])
        y = y + w2_ref[o] * jnp.maximum(h, 0.0)

    o_ref[...] = y + b2_ref[0]


def simple_nn_forward(x, w1, b1, w2, b2, *, block_b=8192):
    """Forward pass of SimpleNN.

    x : (B, 3) float32
    w1: (10, 3), b1: (10,)  -- PyTorch nn.Linear(3, 10) layout
    w2: (1, 10), b2: (1,)   -- PyTorch nn.Linear(10, 1) layout
    returns (B, 1) float32
    """
    B = x.shape[0]
    # Batch lives on lanes -> block width must be a multiple of 128.
    tb = min(block_b, _round_up(B, 128))
    bp = _round_up(B, tb)

    # Layout plumbing in the wrapper: transpose to (3, B) and zero-pad batch.
    xt = jnp.pad(x.astype(jnp.float32).T, ((0, 0), (0, bp - B)))   # (3, bp)

    smem = pl.BlockSpec(memory_space=pltpu.MemorySpace.SMEM)

    out = pl.pallas_call(
        _mlp_kernel,
        out_shape=jax.ShapeDtypeStruct((1, bp), jnp.float32),
        grid=(bp // tb,),
        in_specs=[
            smem,                                      # w1 (10, 3)
            smem,                                      # b1 (10,)
            smem,                                      # w2 (10,)
            smem,                                      # b2 (1,)
            pl.BlockSpec((3, tb), lambda i: (0, i)),   # xT batch tile
        ],
        out_specs=pl.BlockSpec((1, tb), lambda i: (0, i)),
        compiler_params=pltpu.CompilerParams(
            dimension_semantics=("parallel",)),
    )(
        w1.astype(jnp.float32),
        b1.astype(jnp.float32),
        w2.reshape(10).astype(jnp.float32),
        b2.reshape(1).astype(jnp.float32),
        xt,
    )
    return out[0, :B].reshape(B, 1)


def init_params(key):
    """Deterministic init matching PyTorch nn.Linear default (uniform +-1/sqrt(fan_in))."""
    k1, k2, k3, k4 = jax.random.split(key, 4)
    bound1 = 1.0 / jnp.sqrt(3.0)    # fan_in = 3
    bound2 = 1.0 / jnp.sqrt(10.0)   # fan_in = 10
    w1 = jax.random.uniform(k1, (10, 3), jnp.float32, -bound1, bound1)
    b1 = jax.random.uniform(k2, (10,), jnp.float32, -bound1, bound1)
    w2 = jax.random.uniform(k3, (1, 10), jnp.float32, -bound2, bound2)
    b2 = jax.random.uniform(k4, (1,), jnp.float32, -bound2, bound2)
    return w1, b1, w2, b2


def _reference(x, w1, b1, w2, b2):
    return jnp.maximum(x @ w1.T + b1, 0.0) @ w2.T + b2


if __name__ == "__main__":
    key = jax.random.PRNGKey(0)
    k_params, k_x1, k_x2 = jax.random.split(key, 3)
    w1, b1, w2, b2 = init_params(k_params)

    # Small demo batch (single grid step).
    B = 8
    x = jax.random.normal(k_x1, (B, 3), jnp.float32)
    out = jax.block_until_ready(simple_nn_forward(x, w1, b1, w2, b2))
    ref = _reference(x, w1, b1, w2, b2)
    assert out.shape == (B, 1)
    assert jnp.allclose(out, ref, atol=1e-5, rtol=1e-5)

    # Multi-block + padding path: B=300 with 128-wide blocks -> grid=(3,),
    # last block zero-padded and sliced off in the wrapper.
    B2 = 300
    x2 = jax.random.normal(k_x2, (B2, 3), jnp.float32)
    out2 = jax.block_until_ready(
        simple_nn_forward(x2, w1, b1, w2, b2, block_b=128))
    ref2 = _reference(x2, w1, b1, w2, b2)
    assert out2.shape == (B2, 1)
    assert jnp.allclose(out2, ref2, atol=1e-5, rtol=1e-5)

    print("KERNEL_OK")
</pallas_src>

<mosaic_0001>
module attributes {stable_mosaic.version = 11 : i64} {
  func.func @_mlp_kernel(%arg0: i32, %arg1: memref<10x3xf32, #tpu.memory_space<smem>>, %arg2: memref<10xf32, #tpu.memory_space<smem>>, %arg3: memref<10xf32, #tpu.memory_space<smem>>, %arg4: memref<1xf32, #tpu.memory_space<smem>>, %arg5: memref<3x128xf32, #tpu.memory_space<vmem>>, %arg6: memref<1x128xf32, #tpu.memory_space<vmem>>) attributes {dimension_semantics = [#tpu.dimension_semantics<parallel>], iteration_bounds = array<i64: 1>, scalar_prefetch = 0 : i64, scratch_operands = 0 : i64, tpu.core_type = #tpu.core_type<tc>, window_params = [{transform_indices = @transform_0, window_bounds = array<i64: 10, 3>}, {transform_indices = @transform_1, window_bounds = array<i64: 10>}, {transform_indices = @transform_2, window_bounds = array<i64: 10>}, {transform_indices = @transform_3, window_bounds = array<i64: 1>}, {transform_indices = @transform_4, window_bounds = array<i64: 3, 128>}, {transform_indices = @transform_5, window_bounds = array<i64: 1, 128>}]} {
    %c0 = arith.constant 0 : index
    %c0_0 = arith.constant 0 : index
    %0 = vector.load %arg5[%c0, %c0_0] : memref<3x128xf32, #tpu.memory_space<vmem>>, vector<1x128xf32>
    %c1 = arith.constant 1 : index
    %c0_1 = arith.constant 0 : index
    %1 = vector.load %arg5[%c1, %c0_1] : memref<3x128xf32, #tpu.memory_space<vmem>>, vector<1x128xf32>
    %c2 = arith.constant 2 : index
    %c0_2 = arith.constant 0 : index
    %2 = vector.load %arg5[%c2, %c0_2] : memref<3x128xf32, #tpu.memory_space<vmem>>, vector<1x128xf32>
    %cst = arith.constant 0.000000e+00 : f32
    %3 = vector.broadcast %cst : f32 to vector<1x128xf32>
    %c0_3 = arith.constant 0 : index
    %c0_4 = arith.constant 0 : index
    %4 = memref.load %arg1[%c0_3, %c0_4] : memref<10x3xf32, #tpu.memory_space<smem>>
    %5 = vector.broadcast %4 : f32 to vector<1x128xf32>
    %6 = arith.mulf %5, %0 : vector<1x128xf32>
    %c0_5 = arith.constant 0 : index
    %c1_6 = arith.constant 1 : index
    %7 = memref.load %arg1[%c0_5, %c1_6] : memref<10x3xf32, #tpu.memory_space<smem>>
    %8 = vector.broadcast %7 : f32 to vector<1x128xf32>
    %9 = arith.mulf %8, %1 : vector<1x128xf32>
    %10 = arith.addf %6, %9 : vector<1x128xf32>
    %c0_7 = arith.constant 0 : index
    %c2_8 = arith.constant 2 : index
    %11 = memref.load %arg1[%c0_7, %c2_8] : memref<10x3xf32, #tpu.memory_space<smem>>
    %12 = vector.broadcast %11 : f32 to vector<1x128xf32>
    %13 = arith.mulf %12, %2 : vector<1x128xf32>
    %14 = arith.addf %10, %13 : vector<1x128xf32>
    %c0_9 = arith.constant 0 : index
    %15 = memref.load %arg2[%c0_9] : memref<10xf32, #tpu.memory_space<smem>>
    %16 = vector.broadcast %15 : f32 to vector<1x128xf32>
    %17 = arith.addf %14, %16 : vector<1x128xf32>
    %c0_10 = arith.constant 0 : index
    %18 = memref.load %arg3[%c0_10] : memref<10xf32, #tpu.memory_space<smem>>
    %cst_11 = arith.constant 0.000000e+00 : f32
    %19 = vector.broadcast %cst_11 : f32 to vector<1x128xf32>
    %20 = arith.maximumf %17, %19 : vector<1x128xf32>
    %21 = vector.broadcast %18 : f32 to vector<1x128xf32>
    %22 = arith.mulf %21, %20 : vector<1x128xf32>
    %23 = arith.addf %3, %22 : vector<1x128xf32>
    %c1_12 = arith.constant 1 : index
    %c0_13 = arith.constant 0 : index
    %24 = memref.load %arg1[%c1_12, %c0_13] : memref<10x3xf32, #tpu.memory_space<smem>>
    %25 = vector.broadcast %24 : f32 to vector<1x128xf32>
    %26 = arith.mulf %25, %0 : vector<1x128xf32>
    %c1_14 = arith.constant 1 : index
    %c1_15 = arith.constant 1 : index
    %27 = memref.load %arg1[%c1_14, %c1_15] : memref<10x3xf32, #tpu.memory_space<smem>>
    %28 = vector.broadcast %27 : f32 to vector<1x128xf32>
    %29 = arith.mulf %28, %1 : vector<1x128xf32>
    %30 = arith.addf %26, %29 : vector<1x128xf32>
    %c1_16 = arith.constant 1 : index
    %c2_17 = arith.constant 2 : index
    %31 = memref.load %arg1[%c1_16, %c2_17] : memref<10x3xf32, #tpu.memory_space<smem>>
    %32 = vector.broadcast %31 : f32 to vector<1x128xf32>
    %33 = arith.mulf %32, %2 : vector<1x128xf32>
    %34 = arith.addf %30, %33 : vector<1x128xf32>
    %c1_18 = arith.constant 1 : index
    %35 = memref.load %arg2[%c1_18] : memref<10xf32, #tpu.memory_space<smem>>
    %36 = vector.broadcast %35 : f32 to vector<1x128xf32>
    %37 = arith.addf %34, %36 : vector<1x128xf32>
    %c1_19 = arith.constant 1 : index
    %38 = memref.load %arg3[%c1_19] : memref<10xf32, #tpu.memory_space<smem>>
    %cst_20 = arith.constant 0.000000e+00 : f32
    %39 = vector.broadcast %cst_20 : f32 to vector<1x128xf32>
    %40 = arith.maximumf %37, %39 : vector<1x128xf32>
    %41 = vector.broadcast %38 : f32 to vector<1x128xf32>
    %42 = arith.mulf %41, %40 : vector<1x128xf32>
    %43 = arith.addf %23, %42 : vector<1x128xf32>
    %c2_21 = arith.constant 2 : index
    %c0_22 = arith.constant 0 : index
    %44 = memref.load %arg1[%c2_21, %c0_22] : memref<10x3xf32, #tpu.memory_space<smem>>
    %45 = vector.broadcast %44 : f32 to vector<1x128xf32>
    %46 = arith.mulf %45, %0 : vector<1x128xf32>
    %c2_23 = arith.constant 2 : index
    %c1_24 = arith.constant 1 : index
    %47 = memref.load %arg1[%c2_23, %c1_24] : memref<10x3xf32, #tpu.memory_space<smem>>
    %48 = vector.broadcast %47 : f32 to vector<1x128xf32>
    %49 = arith.mulf %48, %1 : vector<1x128xf32>
    %50 = arith.addf %46, %49 : vector<1x128xf32>
    %c2_25 = arith.constant 2 : index
    %c2_26 = arith.constant 2 : index
    %51 = memref.load %arg1[%c2_25, %c2_26] : memref<10x3xf32, #tpu.memory_space<smem>>
    %52 = vector.broadcast %51 : f32 to vector<1x128xf32>
    %53 = arith.mulf %52, %2 : vector<1x128xf32>
    %54 = arith.addf %50, %53 : vector<1x128xf32>
    %c2_27 = arith.constant 2 : index
    %55 = memref.load %arg2[%c2_27] : memref<10xf32, #tpu.memory_space<smem>>
    %56 = vector.broadcast %55 : f32 to vector<1x128xf32>
    %57 = arith.addf %54, %56 : vector<1x128xf32>
    %c2_28 = arith.constant 2 : index
    %58 = memref.load %arg3[%c2_28] : memref<10xf32, #tpu.memory_space<smem>>
    %cst_29 = arith.constant 0.000000e+00 : f32
    %59 = vector.broadcast %cst_29 : f32 to vector<1x128xf32>
    %60 = arith.maximumf %57, %59 : vector<1x128xf32>
    %61 = vector.broadcast %58 : f32 to vector<1x128xf32>
    %62 = arith.mulf %61, %60 : vector<1x128xf32>
    %63 = arith.addf %43, %62 : vector<1x128xf32>
    %c3 = arith.constant 3 : index
    %c0_30 = arith.constant 0 : index
    %64 = memref.load %arg1[%c3, %c0_30] : memref<10x3xf32, #tpu.memory_space<smem>>
    %65 = vector.broadcast %64 : f32 to vector<1x128xf32>
    %66 = arith.mulf %65, %0 : vector<1x128xf32>
    %c3_31 = arith.constant 3 : index
    %c1_32 = arith.constant 1 : index
    %67 = memref.load %arg1[%c3_31, %c1_32] : memref<10x3xf32, #tpu.memory_space<smem>>
    %68 = vector.broadcast %67 : f32 to vector<1x128xf32>
    %69 = arith.mulf %68, %1 : vector<1x128xf32>
    %70 = arith.addf %66, %69 : vector<1x128xf32>
    %c3_33 = arith.constant 3 : index
    %c2_34 = arith.constant 2 : index
    %71 = memref.load %arg1[%c3_33, %c2_34] : memref<10x3xf32, #tpu.memory_space<smem>>
    %72 = vector.broadcast %71 : f32 to vector<1x128xf32>
    %73 = arith.mulf %72, %2 : vector<1x128xf32>
    %74 = arith.addf %70, %73 : vector<1x128xf32>
    %c3_35 = arith.constant 3 : index
    %75 = memref.load %arg2[%c3_35] : memref<10xf32, #tpu.memory_space<smem>>
    %76 = vector.broadcast %75 : f32 to vector<1x128xf32>
    %77 = arith.addf %74, %76 : vector<1x128xf32>
    %c3_36 = arith.constant 3 : index
    %78 = memref.load %arg3[%c3_36] : memref<10xf32, #tpu.memory_space<smem>>
    %cst_37 = arith.constant 0.000000e+00 : f32
    %79 = vector.broadcast %cst_37 : f32 to vector<1x128xf32>
    %80 = arith.maximumf %77, %79 : vector<1x128xf32>
    %81 = vector.broadcast %78 : f32 to vector<1x128xf32>
    %82 = arith.mulf %81, %80 : vector<1x128xf32>
    %83 = arith.addf %63, %82 : vector<1x128xf32>
    %c4 = arith.constant 4 : index
    %c0_38 = arith.constant 0 : index
    %84 = memref.load %arg1[%c4, %c0_38] : memref<10x3xf32, #tpu.memory_space<smem>>
    %85 = vector.broadcast %84 : f32 to vector<1x128xf32>
    %86 = arith.mulf %85, %0 : vector<1x128xf32>
    %c4_39 = arith.constant 4 : index
    %c1_40 = arith.constant 1 : index
    %87 = memref.load %arg1[%c4_39, %c1_40] : memref<10x3xf32, #tpu.memory_space<smem>>
    %88 = vector.broadcast %87 : f32 to vector<1x128xf32>
    %89 = arith.mulf %88, %1 : vector<1x128xf32>
    %90 = arith.addf %86, %89 : vector<1x128xf32>
    %c4_41 = arith.constant 4 : index
    %c2_42 = arith.constant 2 : index
    %91 = memref.load %arg1[%c4_41, %c2_42] : memref<10x3xf32, #tpu.memory_space<smem>>
    %92 = vector.broadcast %91 : f32 to vector<1x128xf32>
    %93 = arith.mulf %92, %2 : vector<1x128xf32>
    %94 = arith.addf %90, %93 : vector<1x128xf32>
    %c4_43 = arith.constant 4 : index
    %95 = memref.load %arg2[%c4_43] : memref<10xf32, #tpu.memory_space<smem>>
    %96 = vector.broadcast %95 : f32 to vector<1x128xf32>
    %97 = arith.addf %94, %96 : vector<1x128xf32>
    %c4_44 = arith.constant 4 : index
    %98 = memref.load %arg3[%c4_44] : memref<10xf32, #tpu.memory_space<smem>>
    %cst_45 = arith.constant 0.000000e+00 : f32
    %99 = vector.broadcast %cst_45 : f32 to vector<1x128xf32>
    %100 = arith.maximumf %97, %99 : vector<1x128xf32>
    %101 = vector.broadcast %98 : f32 to vector<1x128xf32>
    %102 = arith.mulf %101, %100 : vector<1x128xf32>
    %103 = arith.addf %83, %102 : vector<1x128xf32>
    %c5 = arith.constant 5 : index
    %c0_46 = arith.constant 0 : index
    %104 = memref.load %arg1[%c5, %c0_46] : memref<10x3xf32, #tpu.memory_space<smem>>
    %105 = vector.broadcast %104 : f32 to vector<1x128xf32>
    %106 = arith.mulf %105, %0 : vector<1x128xf32>
    %c5_47 = arith.constant 5 : index
    %c1_48 = arith.constant 1 : index
    %107 = memref.load %arg1[%c5_47, %c1_48] : memref<10x3xf32, #tpu.memory_space<smem>>
    %108 = vector.broadcast %107 : f32 to vector<1x128xf32>
    %109 = arith.mulf %108, %1 : vector<1x128xf32>
    %110 = arith.addf %106, %109 : vector<1x128xf32>
    %c5_49 = arith.constant 5 : index
    %c2_50 = arith.constant 2 : index
    %111 = memref.load %arg1[%c5_49, %c2_50] : memref<10x3xf32, #tpu.memory_space<smem>>
    %112 = vector.broadcast %111 : f32 to vector<1x128xf32>
    %113 = arith.mulf %112, %2 : vector<1x128xf32>
    %114 = arith.addf %110, %113 : vector<1x128xf32>
    %c5_51 = arith.constant 5 : index
    %115 = memref.load %arg2[%c5_51] : memref<10xf32, #tpu.memory_space<smem>>
    %116 = vector.broadcast %115 : f32 to vector<1x128xf32>
    %117 = arith.addf %114, %116 : vector<1x128xf32>
    %c5_52 = arith.constant 5 : index
    %118 = memref.load %arg3[%c5_52] : memref<10xf32, #tpu.memory_space<smem>>
    %cst_53 = arith.constant 0.000000e+00 : f32
    %119 = vector.broadcast %cst_53 : f32 to vector<1x128xf32>
    %120 = arith.maximumf %117, %119 : vector<1x128xf32>
    %121 = vector.broadcast %118 : f32 to vector<1x128xf32>
    %122 = arith.mulf %121, %120 : vector<1x128xf32>
    %123 = arith.addf %103, %122 : vector<1x128xf32>
    %c6 = arith.constant 6 : index
    %c0_54 = arith.constant 0 : index
    %124 = memref.load %arg1[%c6, %c0_54] : memref<10x3xf32, #tpu.memory_space<smem>>
    %125 = vector.broadcast %124 : f32 to vector<1x128xf32>
    %126 = arith.mulf %125, %0 : vector<1x128xf32>
    %c6_55 = arith.constant 6 : index
    %c1_56 = arith.constant 1 : index
    %127 = memref.load %arg1[%c6_55, %c1_56] : memref<10x3xf32, #tpu.memory_space<smem>>
    %128 = vector.broadcast %127 : f32 to vector<1x128xf32>
    %129 = arith.mulf %128, %1 : vector<1x128xf32>
    %130 = arith.addf %126, %129 : vector<1x128xf32>
    %c6_57 = arith.constant 6 : index
    %c2_58 = arith.constant 2 : index
    %131 = memref.load %arg1[%c6_57, %c2_58] : memref<10x3xf32, #tpu.memory_space<smem>>
    %132 = vector.broadcast %131 : f32 to vector<1x128xf32>
    %133 = arith.mulf %132, %2 : vector<1x128xf32>
    %134 = arith.addf %130, %133 : vector<1x128xf32>
    %c6_59 = arith.constant 6 : index
    %135 = memref.load %arg2[%c6_59] : memref<10xf32, #tpu.memory_space<smem>>
    %136 = vector.broadcast %135 : f32 to vector<1x128xf32>
    %137 = arith.addf %134, %136 : vector<1x128xf32>
    %c6_60 = arith.constant 6 : index
    %138 = memref.load %arg3[%c6_60] : memref<10xf32, #tpu.memory_space<smem>>
    %cst_61 = arith.constant 0.000000e+00 : f32
    %139 = vector.broadcast %cst_61 : f32 to vector<1x128xf32>
    %140 = arith.maximumf %137, %139 : vector<1x128xf32>
    %141 = vector.broadcast %138 : f32 to vector<1x128xf32>
    %142 = arith.mulf %141, %140 : vector<1x128xf32>
    %143 = arith.addf %123, %142 : vector<1x128xf32>
    %c7 = arith.constant 7 : index
    %c0_62 = arith.constant 0 : index
    %144 = memref.load %arg1[%c7, %c0_62] : memref<10x3xf32, #tpu.memory_space<smem>>
    %145 = vector.broadcast %144 : f32 to vector<1x128xf32>
    %146 = arith.mulf %145, %0 : vector<1x128xf32>
    %c7_63 = arith.constant 7 : index
    %c1_64 = arith.constant 1 : index
    %147 = memref.load %arg1[%c7_63, %c1_64] : memref<10x3xf32, #tpu.memory_space<smem>>
    %148 = vector.broadcast %147 : f32 to vector<1x128xf32>
    %149 = arith.mulf %148, %1 : vector<1x128xf32>
    %150 = arith.addf %146, %149 : vector<1x128xf32>
    %c7_65 = arith.constant 7 : index
    %c2_66 = arith.constant 2 : index
    %151 = memref.load %arg1[%c7_65, %c2_66] : memref<10x3xf32, #tpu.memory_space<smem>>
    %152 = vector.broadcast %151 : f32 to vector<1x128xf32>
    %153 = arith.mulf %152, %2 : vector<1x128xf32>
    %154 = arith.addf %150, %153 : vector<1x128xf32>
    %c7_67 = arith.constant 7 : index
    %155 = memref.load %arg2[%c7_67] : memref<10xf32, #tpu.memory_space<smem>>
    %156 = vector.broadcast %155 : f32 to vector<1x128xf32>
    %157 = arith.addf %154, %156 : vector<1x128xf32>
    %c7_68 = arith.constant 7 : index
    %158 = memref.load %arg3[%c7_68] : memref<10xf32, #tpu.memory_space<smem>>
    %cst_69 = arith.constant 0.000000e+00 : f32
    %159 = vector.broadcast %cst_69 : f32 to vector<1x128xf32>
    %160 = arith.maximumf %157, %159 : vector<1x128xf32>
    %161 = vector.broadcast %158 : f32 to vector<1x128xf32>
    %162 = arith.mulf %161, %160 : vector<1x128xf32>
    %163 = arith.addf %143, %162 : vector<1x128xf32>
    %c8 = arith.constant 8 : index
    %c0_70 = arith.constant 0 : index
    %164 = memref.load %arg1[%c8, %c0_70] : memref<10x3xf32, #tpu.memory_space<smem>>
    %165 = vector.broadcast %164 : f32 to vector<1x128xf32>
    %166 = arith.mulf %165, %0 : vector<1x128xf32>
    %c8_71 = arith.constant 8 : index
    %c1_72 = arith.constant 1 : index
    %167 = memref.load %arg1[%c8_71, %c1_72] : memref<10x3xf32, #tpu.memory_space<smem>>
    %168 = vector.broadcast %167 : f32 to vector<1x128xf32>
    %169 = arith.mulf %168, %1 : vector<1x128xf32>
    %170 = arith.addf %166, %169 : vector<1x128xf32>
    %c8_73 = arith.constant 8 : index
    %c2_74 = arith.constant 2 : index
    %171 = memref.load %arg1[%c8_73, %c2_74] : memref<10x3xf32, #tpu.memory_space<smem>>
    %172 = vector.broadcast %171 : f32 to vector<1x128xf32>
    %173 = arith.mulf %172, %2 : vector<1x128xf32>
    %174 = arith.addf %170, %173 : vector<1x128xf32>
    %c8_75 = arith.constant 8 : index
    %175 = memref.load %arg2[%c8_75] : memref<10xf32, #tpu.memory_space<smem>>
    %176 = vector.broadcast %175 : f32 to vector<1x128xf32>
    %177 = arith.addf %174, %176 : vector<1x128xf32>
    %c8_76 = arith.constant 8 : index
    %178 = memref.load %arg3[%c8_76] : memref<10xf32, #tpu.memory_space<smem>>
    %cst_77 = arith.constant 0.000000e+00 : f32
    %179 = vector.broadcast %cst_77 : f32 to vector<1x128xf32>
    %180 = arith.maximumf %177, %179 : vector<1x128xf32>
    %181 = vector.broadcast %178 : f32 to vector<1x128xf32>
    %182 = arith.mulf %181, %180 : vector<1x128xf32>
    %183 = arith.addf %163, %182 : vector<1x128xf32>
    %c9 = arith.constant 9 : index
    %c0_78 = arith.constant 0 : index
    %184 = memref.load %arg1[%c9, %c0_78] : memref<10x3xf32, #tpu.memory_space<smem>>
    %185 = vector.broadcast %184 : f32 to vector<1x128xf32>
    %186 = arith.mulf %185, %0 : vector<1x128xf32>
    %c9_79 = arith.constant 9 : index
    %c1_80 = arith.constant 1 : index
    %187 = memref.load %arg1[%c9_79, %c1_80] : memref<10x3xf32, #tpu.memory_space<smem>>
    %188 = vector.broadcast %187 : f32 to vector<1x128xf32>
    %189 = arith.mulf %188, %1 : vector<1x128xf32>
    %190 = arith.addf %186, %189 : vector<1x128xf32>
    %c9_81 = arith.constant 9 : index
    %c2_82 = arith.constant 2 : index
    %191 = memref.load %arg1[%c9_81, %c2_82] : memref<10x3xf32, #tpu.memory_space<smem>>
    %192 = vector.broadcast %191 : f32 to vector<1x128xf32>
    %193 = arith.mulf %192, %2 : vector<1x128xf32>
    %194 = arith.addf %190, %193 : vector<1x128xf32>
    %c9_83 = arith.constant 9 : index
    %195 = memref.load %arg2[%c9_83] : memref<10xf32, #tpu.memory_space<smem>>
    %196 = vector.broadcast %195 : f32 to vector<1x128xf32>
    %197 = arith.addf %194, %196 : vector<1x128xf32>
    %c9_84 = arith.constant 9 : index
    %198 = memref.load %arg3[%c9_84] : memref<10xf32, #tpu.memory_space<smem>>
    %cst_85 = arith.constant 0.000000e+00 : f32
    %199 = vector.broadcast %cst_85 : f32 to vector<1x128xf32>
    %200 = arith.maximumf %197, %199 : vector<1x128xf32>
    %201 = vector.broadcast %198 : f32 to vector<1x128xf32>
    %202 = arith.mulf %201, %200 : vector<1x128xf32>
    %203 = arith.addf %183, %202 : vector<1x128xf32>
    %c0_86 = arith.constant 0 : index
    %204 = memref.load %arg4[%c0_86] : memref<1xf32, #tpu.memory_space<smem>>
    %205 = vector.broadcast %204 : f32 to vector<1x128xf32>
    %206 = arith.addf %203, %205 : vector<1x128xf32>
    %c0_87 = arith.constant 0 : index
    %c0_88 = arith.constant 0 : index
    %207 = vector.load %arg6[%c0_87, %c0_88] : memref<1x128xf32, #tpu.memory_space<vmem>>, vector<1x128xf32>
    tpu.vector_store %arg6[%c0_87, %c0_88], %206 {strides = array<i32>} : memref<1x128xf32, #tpu.memory_space<vmem>>, vector<1x128xf32>,
    return
  }
  func.func @transform_0(%arg0: i32) -> (i32, i32) {
    %c0_i32 = arith.constant 0 : i32
    %c0_i32_0 = arith.constant 0 : i32
    %c0_i32_1 = arith.constant 0 : i32
    return %c0_i32, %c0_i32_0 : i32, i32
  }
  func.func @transform_1(%arg0: i32) -> i32 {
    %c0_i32 = arith.constant 0 : i32
    %c0_i32_0 = arith.constant 0 : i32
    return %c0_i32 : i32
  }
  func.func @transform_2(%arg0: i32) -> i32 {
    %c0_i32 = arith.constant 0 : i32
    %c0_i32_0 = arith.constant 0 : i32
    return %c0_i32 : i32
  }
  func.func @transform_3(%arg0: i32) -> i32 {
    %c0_i32 = arith.constant 0 : i32
    %c0_i32_0 = arith.constant 0 : i32
    return %c0_i32 : i32
  }
  func.func @transform_4(%arg0: i32) -> (i32, i32) {
    %c0_i32 = arith.constant 0 : i32
    %c0_i32_0 = arith.constant 0 : i32
    return %c0_i32, %arg0 : i32, i32
  }
  func.func @transform_5(%arg0: i32) -> (i32, i32) {
    %c0_i32 = arith.constant 0 : i32
    %c0_i32_0 = arith.constant 0 : i32
    return %c0_i32, %arg0 : i32, i32
  }
}

</mosaic_0001>

<llo_original>
// kernel: tpu_custom_call.1
$region0: #{tpu_custom_call.1}
  #allocation0 [shape = 'u32[]', space=smem, size = 0x4, offset = 0x4, fixed_abs, tag = 'smem constant byte address 0x4 - core index']
  #allocation1 [shape = 'u32[144,128]{1,0:T(1,128)}', space=vmem, size = 0x12000, scoped, tag = 'internal scratch']
  #allocation2 [shape = 'f32[1]{0:T(128)S(6)}', space=smem, size = 0x200, scoped, tag = 'scoped memory for tpu_custom_call.1']
  %s0 = inlined_call_operand.vmem [shape: f32[10,3], index: 0, kind: input, shape index: {}]
  %s1 = inlined_call_operand.vmem [shape: f32[10], index: 1, kind: input, shape index: {}]
  %s2 = inlined_call_operand.vmem [shape: f32[10], index: 2, kind: input, shape index: {}]
  %s3 = inlined_call_operand.<no memory space> [shape: f32[1], index: 3, kind: input, shape index: {}]
  %s4 = inlined_call_operand.vmem [shape: f32[3,128], index: 4, kind: input, shape index: {}]
  %s5 = inlined_call_operand.hbm [shape: f32[1,128], index: 5, kind: output, shape index: {}]
  %s6 = sld [smem:[#allocation0]]
  $region42: #{tpu_custom_call.1} parent=0
    _
  %s8 = ssub.s32 1, %s6
  %s9 = scalar_select 0, %s8, %s6
  %10 = sst [smem:[#allocation2]] %s3
  $region1: #{tpu_custom_call.1} parent=0
    #allocation3 [shape = 'u8[8192]{0}', space=smem, size = 0x2000, scoped, tag = 'input window, operand 0, single buffered']
    #allocation4 [shape = 's32[1]{0}', space=sflag, size = 0x4, scoped, tag = 'scoped memory for tpu_custom_call.1']
    #allocation5 [shape = 's32[1]{0}', space=sflag, size = 0x4, scoped, tag = 'scoped memory for tpu_custom_call.1']
    #allocation6 [shape = 'u8[512]{0}', space=smem, size = 0x200, scoped, tag = 'input window, operand 1, single buffered']
    #allocation7 [shape = 's32[1]{0}', space=sflag, size = 0x4, scoped, tag = 'scoped memory for tpu_custom_call.1']
    #allocation8 [shape = 'u8[512]{0}', space=smem, size = 0x200, scoped, tag = 'input window, operand 2, single buffered']
    #allocation9 [shape = 'u8[512]{0}', space=vmem, size = 0x400, scoped, tag = 'output window, operand 0, single buffered']
    %11 = vsyncpa [#allocation5], 0
    %12 = vsyncpa [#allocation7], 0
    %13 = vsyncpa [#allocation4], 0
    // Predicated region
    $region2: #{tpu_custom_call.1} parent=1 // pred_check
      _
    $region3: #{tpu_custom_call.1} parent=1 // pred_check_branch
      %15 = sbr.rel (0) target = $region5
    $region4: #{tpu_custom_call.1} parent=1 // pred_region
      %s17 = ssub.s32 256, 256
      %18 = vsyncadd [#allocation5], %s17
      %s19 = sshll.u32 %s0, 4
      %s20 = int_to_ptr.vmem [resolvable:$true] %s19
      %25 = dma.vmem_to_smem %s20, 256, [#allocation3], [#allocation5], 128, 128, 8
    $region5: #{tpu_custom_call.1} parent=1 // pred_fallthru
      _
    // Predicated region
    $region6: #{tpu_custom_call.1} parent=1 // pred_check
      _
    $region7: #{tpu_custom_call.1} parent=1 // pred_check_branch
      %27 = sbr.rel (0) target = $region9
    $region8: #{tpu_custom_call.1} parent=1 // pred_region
      %s29 = ssub.s32 16, 16
      %30 = vsyncadd [#allocation7], %s29
      %s32 = sshll.u32 %s1, 4
      %s33 = int_to_ptr.vmem [resolvable:$true] %s32
      %35 = dma.vmem_to_smem %s33, 16, [#allocation6], [#allocation7]
    $region9: #{tpu_custom_call.1} parent=1 // pred_fallthru
      _
    // Predicated region
    $region10: #{tpu_custom_call.1} parent=1 // pred_check
      _
    $region11: #{tpu_custom_call.1} parent=1 // pred_check_branch
      %37 = sbr.rel (0) target = $region13
    $region12: #{tpu_custom_call.1} parent=1 // pred_region
      %s39 = ssub.s32 16, 16
      %40 = vsyncadd [#allocation7], %s39
      %s42 = sshll.u32 %s2, 4
      %s43 = int_to_ptr.vmem [resolvable:$true] %s42
      %45 = dma.vmem_to_smem %s43, 16, [#allocation8], [#allocation7]
    $region13: #{tpu_custom_call.1} parent=1 // pred_fallthru
      _
    // Predicated region
    $region14: #{tpu_custom_call.1} parent=1 // pred_check
      _
    $region15: #{tpu_custom_call.1} parent=1 // pred_check_branch
      %47 = sbr.rel (0) target = $region17
    $region16: #{tpu_custom_call.1} parent=1 // pred_region
      _
    $region17: #{tpu_custom_call.1} parent=1 // pred_fallthru
      _
    // Predicated region
    $region18: #{tpu_custom_call.1} parent=1 // pred_check
      _
    $region19: #{tpu_custom_call.1} parent=1 // pred_check_branch
      %49 = sbr.rel (0) target = $region21
    $region20: #{tpu_custom_call.1} parent=1 // pred_region
      _
    $region21: #{tpu_custom_call.1} parent=1 // pred_fallthru
      _
    // Predicated region
    $region22: #{tpu_custom_call.1} parent=1 // pred_check
      _
    $region23: #{tpu_custom_call.1} parent=1 // pred_check_branch
      %51 = sbr.rel (0) target = $region25
    $region24: #{tpu_custom_call.1} parent=1 // pred_region
      %52 = dma.done [#allocation5], 256
    $region25: #{tpu_custom_call.1} parent=1 // pred_fallthru
      _
    // Predicated region
    $region26: #{tpu_custom_call.1} parent=1 // pred_check
      _
    $region27: #{tpu_custom_call.1} parent=1 // pred_check_branch
      %54 = sbr.rel (0) target = $region29
    $region28: #{tpu_custom_call.1} parent=1 // pred_region
      %55 = dma.done [#allocation7], 16
    $region29: #{tpu_custom_call.1} parent=1 // pred_fallthru
      _
    // Predicated region
    $region30: #{tpu_custom_call.1} parent=1 // pred_check
      _
    $region31: #{tpu_custom_call.1} parent=1 // pred_check_branch
      %57 = sbr.rel (0) target = $region33
    $region32: #{tpu_custom_call.1} parent=1 // pred_region
      %58 = dma.done [#allocation7], 16
    $region33: #{tpu_custom_call.1} parent=1 // pred_fallthru
      _
    %59 = sfence
    %v60 = vld [vmem:[%s4] sm:$0x1]
    %v61 = vld [vmem:[%s4 + $0x1] sm:$0x1]
    %v62 = vld [vmem:[%s4 + $0x2] sm:$0x1]
    %s63 = sld [smem:[#allocation3]]
    %v64 = vstv %s63
    %v65 = vmul.f32 %v64, %v60
    %s66 = sld [smem:[#allocation3 + $0x1]]
    %v67 = vstv %s66
    %v68 = vmul.f32 %v67, %v61
    %v69 = vadd.f32 %v65, %v68
    %s70 = sld [smem:[#allocation3 + $0x2]]
    %v71 = vstv %s70
    %v72 = vmul.f32 %v71, %v62
    %v73 = vadd.f32 %v69, %v72
    %s74 = sld [smem:[#allocation6]]
    %v75 = vstv %s74
    %v76 = vadd.f32 %v73, %v75
    %s77 = sld [smem:[#allocation8]]
    %v78 = vmax.f32 %v76, 0.0
    %v79 = vstv %s77
    %v80 = vmul.f32 %v79, %v78
    %v81 = vadd.f32 %v80, 0.0
    %s82 = sld [smem:[#allocation3 + $0x80]]
    %v83 = vstv %s82
    %v84 = vmul.f32 %v83, %v60
    %s85 = sld [smem:[#allocation3 + $0x81]]
    %v86 = vstv %s85
    %v87 = vmul.f32 %v86, %v61
    %v88 = vadd.f32 %v84, %v87
    %s89 = sld [smem:[#allocation3 + $0x82]]
    %v90 = vstv %s89
    %v91 = vmul.f32 %v90, %v62
    %v92 = vadd.f32 %v88, %v91
    %s93 = sld [smem:[#allocation6 + $0x1]]
    %v94 = vstv %s93
    %v95 = vadd.f32 %v92, %v94
    %s96 = sld [smem:[#allocation8 + $0x1]]
    %v97 = vmax.f32 %v95, 0.0
    %v98 = vstv %s96
    %v99 = vmul.f32 %v98, %v97
    %v100 = vadd.f32 %v81, %v99
    %s101 = sld [smem:[#allocation3 + $0x100]]
    %v102 = vstv %s101
    %v103 = vmul.f32 %v102, %v60
    %s104 = sld [smem:[#allocation3 + $0x101]]
    %v105 = vstv %s104
    %v106 = vmul.f32 %v105, %v61
    %v107 = vadd.f32 %v103, %v106
    %s108 = sld [smem:[#allocation3 + $0x102]]
    %v109 = vstv %s108
    %v110 = vmul.f32 %v109, %v62
    %v111 = vadd.f32 %v107, %v110
    %s112 = sld [smem:[#allocation6 + $0x2]]
    %v113 = vstv %s112
    %v114 = vadd.f32 %v111, %v113
    %s115 = sld [smem:[#allocation8 + $0x2]]
    %v116 = vmax.f32 %v114, 0.0
    %v117 = vstv %s115
    %v118 = vmul.f32 %v117, %v116
    %v119 = vadd.f32 %v100, %v118
    %s120 = sld [smem:[#allocation3 + $0x180]]
    %v121 = vstv %s120
    %v122 = vmul.f32 %v121, %v60
    %s123 = sld [smem:[#allocation3 + $0x181]]
    %v124 = vstv %s123
    %v125 = vmul.f32 %v124, %v61
    %v126 = vadd.f32 %v122, %v125
    %s127 = sld [smem:[#allocation3 + $0x182]]
    %v128 = vstv %s127
    %v129 = vmul.f32 %v128, %v62
    %v130 = vadd.f32 %v126, %v129
    %s131 = sld [smem:[#allocation6 + $0x3]]
    %v132 = vstv %s131
    %v133 = vadd.f32 %v130, %v132
    %s134 = sld [smem:[#allocation8 + $0x3]]
    %v135 = vmax.f32 %v133, 0.0
    %v136 = vstv %s134
    %v137 = vmul.f32 %v136, %v135
    %v138 = vadd.f32 %v119, %v137
    %s139 = sld [smem:[#allocation3 + $0x200]]
    %v140 = vstv %s139
    %v141 = vmul.f32 %v140, %v60
    %s142 = sld [smem:[#allocation3 + $0x201]]
    %v143 = vstv %s142
    %v144 = vmul.f32 %v143, %v61
    %v145 = vadd.f32 %v141, %v144
    %s146 = sld [smem:[#allocation3 + $0x202]]
    %v147 = vstv %s146
    %v148 = vmul.f32 %v147, %v62
    %v149 = vadd.f32 %v145, %v148
    %s150 = sld [smem:[#allocation6 + $0x4]]
    %v151 = vstv %s150
    %v152 = vadd.f32 %v149, %v151
    %s153 = sld [smem:[#allocation8 + $0x4]]
    %v154 = vmax.f32 %v152, 0.0
    %v155 = vstv %s153
    %v156 = vmul.f32 %v155, %v154
    %v157 = vadd.f32 %v138, %v156
    %s158 = sld [smem:[#allocation3 + $0x280]]
    %v159 = vstv %s158
    %v160 = vmul.f32 %v159, %v60
    %s161 = sld [smem:[#allocation3 + $0x281]]
    %v162 = vstv %s161
    %v163 = vmul.f32 %v162, %v61
    %v164 = vadd.f32 %v160, %v163
    %s165 = sld [smem:[#allocation3 + $0x282]]
    %v166 = vstv %s165
    %v167 = vmul.f32 %v166, %v62
    %v168 = vadd.f32 %v164, %v167
    %s169 = sld [smem:[#allocation6 + $0x5]]
    %v170 = vstv %s169
    %v171 = vadd.f32 %v168, %v170
    %s172 = sld [smem:[#allocation8 + $0x5]]
    %v173 = vmax.f32 %v171, 0.0
    %v174 = vstv %s172
    %v175 = vmul.f32 %v174, %v173
    %v176 = vadd.f32 %v157, %v175
    %s177 = sld [smem:[#allocation3 + $0x300]]
    %v178 = vstv %s177
    %v179 = vmul.f32 %v178, %v60
    %s180 = sld [smem:[#allocation3 + $0x301]]
    %v181 = vstv %s180
    %v182 = vmul.f32 %v181, %v61
    %v183 = vadd.f32 %v179, %v182
    %s184 = sld [smem:[#allocation3 + $0x302]]
    %v185 = vstv %s184
    %v186 = vmul.f32 %v185, %v62
    %v187 = vadd.f32 %v183, %v186
    %s188 = sld [smem:[#allocation6 + $0x6]]
    %v189 = vstv %s188
    %v190 = vadd.f32 %v187, %v189
    %s191 = sld [smem:[#allocation8 + $0x6]]
    %v192 = vmax.f32 %v190, 0.0
    %v193 = vstv %s191
    %v194 = vmul.f32 %v193, %v192
    %v195 = vadd.f32 %v176, %v194
    %s196 = sld [smem:[#allocation3 + $0x380]]
    %v197 = vstv %s196
    %v198 = vmul.f32 %v197, %v60
    %s199 = sld [smem:[#allocation3 + $0x381]]
    %v200 = vstv %s199
    %v201 = vmul.f32 %v200, %v61
    %v202 = vadd.f32 %v198, %v201
    %s203 = sld [smem:[#allocation3 + $0x382]]
    %v204 = vstv %s203
    %v205 = vmul.f32 %v204, %v62
    %v206 = vadd.f32 %v202, %v205
    %s207 = sld [smem:[#allocation6 + $0x7]]
    %v208 = vstv %s207
    %v209 = vadd.f32 %v206, %v208
    %s210 = sld [smem:[#allocation8 + $0x7]]
    %v211 = vmax.f32 %v209, 0.0
    %v212 = vstv %s210
    %v213 = vmul.f32 %v212, %v211
    %v214 = vadd.f32 %v195, %v213
    %s215 = sld [smem:[#allocation3 + $0x400]]
    %v216 = vstv %s215
    %v217 = vmul.f32 %v216, %v60
    %s218 = sld [smem:[#allocation3 + $0x401]]
    %v219 = vstv %s218
    %v220 = vmul.f32 %v219, %v61
    %v221 = vadd.f32 %v217, %v220
    %s222 = sld [smem:[#allocation3 + $0x402]]
    %v223 = vstv %s222
    %v224 = vmul.f32 %v223, %v62
    %v225 = vadd.f32 %v221, %v224
    %s226 = sld [smem:[#allocation6 + $0x8]]
    %v227 = vstv %s226
    %v228 = vadd.f32 %v225, %v227
    %s229 = sld [smem:[#allocation8 + $0x8]]
    %v230 = vmax.f32 %v228, 0.0
    %v231 = vstv %s229
    %v232 = vmul.f32 %v231, %v230
    %v233 = vadd.f32 %v214, %v232
    %s234 = sld [smem:[#allocation3 + $0x480]]
    %v235 = vstv %s234
    %v236 = vmul.f32 %v235, %v60
    %s237 = sld [smem:[#allocation3 + $0x481]]
    %v238 = vstv %s237
    %v239 = vmul.f32 %v238, %v61
    %v240 = vadd.f32 %v236, %v239
    %s241 = sld [smem:[#allocation3 + $0x482]]
    %v242 = vstv %s241
    %v243 = vmul.f32 %v242, %v62
    %v244 = vadd.f32 %v240, %v243
    %s245 = sld [smem:[#allocation6 + $0x9]]
    %v246 = vstv %s245
    %v247 = vadd.f32 %v244, %v246
    %s248 = sld [smem:[#allocation8 + $0x9]]
    %v249 = vmax.f32 %v247, 0.0
    %v250 = vstv %s248
    %v251 = vmul.f32 %v250, %v249
    %v252 = vadd.f32 %v233, %v251
    %s253 = sld [smem:[#allocation2]]
    %v254 = vstv %s253
    %v255 = vadd.f32 %v252, %v254
    %256 = vst [vmem:[#allocation9] sm:$0x1] %v255
    // Predicated region
    $region34: #{tpu_custom_call.1} parent=1 // pred_check
      _
    $region35: #{tpu_custom_call.1} parent=1 // pred_check_branch
      %258 = sbr.rel (0) target = $region37
    $region36: #{tpu_custom_call.1} parent=1 // pred_region
      %s260 = ssub.s32 16, 16
      %261 = vsyncadd [#allocation4], %s260
      %s263 = sshll.u32 [#allocation9], 4
      %s264 = int_to_ptr.vmem [resolvable:$true] %s263
      %266 = dma.vmem_to_hbm [thread:$0]  %s264, 16, %s5, [#allocation4]
    $region37: #{tpu_custom_call.1} parent=1 // pred_fallthru
      _
    // Predicated region
    $region38: #{tpu_custom_call.1} parent=1 // pred_check
      _
    $region39: #{tpu_custom_call.1} parent=1 // pred_check_branch
      %268 = sbr.rel (0) target = $region41
    $region40: #{tpu_custom_call.1} parent=1 // pred_region
      %269 = dma.done [#allocation4], 16
    $region41: #{tpu_custom_call.1} parent=1 // pred_fallthru
      _
    %270 = vsyncpa [#allocation4], 1
    %271 = vsyncpa [#allocation5], 1
    %272 = vsyncpa [#allocation7], 1

</llo_original>
